<compile_context>
chip_gen: v7x
topology: tpu7x:2x2x1
jax: 0.10.0
libtpu: 0.0.40
codegen_flags: <defaults>
</compile_context>

<pallas_src>
import functools

import jax
import jax.numpy as jnp
from jax.experimental import pallas as pl
from jax.experimental.pallas import tpu as pltpu

LANE = 128
SUBLANE = 8


def _round_up(n, m):
    return ((n + m - 1) // m) * m


# ----------------------------------------------------------------------------
# Pallas kernel: fc1 + ReLU, fc2 + ReLU, fc3 on the packed layout.
#   x_ref : (tb/pack, pack*d_in)  f32   (cast to bf16 in-kernel)
#   wN    : block-diagonal bf16 weights; bN: (1, pack*slot) f32 tiled biases
#   o_ref : (tb/pack, pack*slot_out) f32, lane-dense packed logits
# ----------------------------------------------------------------------------
def toknet_kernel(x_ref, w1_ref, b1_ref, w2_ref, b2_ref, w3_ref, b3_ref, o_ref):
    # In-kernel f32->bf16 cast (free VPU work; avoids a wrapper-side HBM pass).
    x = x_ref[...].astype(w1_ref.dtype)

    # fc1 + ReLU  (MXU in bf16, f32 accumulate; bias/ReLU in f32)
    h1 = jnp.dot(x, w1_ref[...], preferred_element_type=jnp.float32)
    h1 = jnp.maximum(h1 + b1_ref[...], 0.0)

    # fc2 + ReLU
    h2 = jnp.dot(h1.astype(w2_ref.dtype), w2_ref[...],
                 preferred_element_type=jnp.float32)
    h2 = jnp.maximum(h2 + b2_ref[...], 0.0)

    # fc3 (no activation; LogSoftmax is not applied in forward())
    o = jnp.dot(h2.astype(w3_ref.dtype), w3_ref[...],
                preferred_element_type=jnp.float32)
    o_ref[...] = (o + b3_ref[...]).astype(o_ref.dtype)


# ----------------------------------------------------------------------------
# Parameter prep: choose a pack factor (16 batch rows per 128-lane row for the
# 8/8/8 widths of TokNet), build block-diagonal transposed weights and tiled
# biases.  Zero-padded slot columns + zero biases keep ReLU(0+0)=0 inert.
# ----------------------------------------------------------------------------
def _pack_factor(widths):
    max_w = max(widths)
    if max_w > LANE:
        return 1
    slot = 1
    while slot < max_w:
        slot *= 2
    return LANE // slot          # power-of-two divisor of 128


def prepare_kernel_params(params, compute_dtype=jnp.bfloat16):
    w1, b1 = params["w1"], params["b1"]            # (h1, d_in), (h1,)
    w2, b2 = params["w2"], params["b2"]            # (h2, h1),  (h2,)
    w3, b3 = params["w3"], params["b3"]            # (out, h2), (out,)

    d_in = w1.shape[1]
    h1, h2, n_out = w1.shape[0], w2.shape[0], w3.shape[0]

    pack = _pack_factor((h1, h2, n_out))
    # Prefer a 128-lane-dense packed input block; otherwise fall back to the
    # plain (unpacked, 128-padded) layout which is always legal.
    if (pack * d_in) % LANE != 0:
        pack = 1
    slot_align = LANE // pack                      # per-row slot granularity
    s1, s2, s3 = (_round_up(h1, slot_align),
                  _round_up(h2, slot_align),
                  _round_up(n_out, slot_align))

    def bd_weight(w, s_in, s_out):
        # PyTorch weight (fan_out, fan_in) -> padded (s_in, s_out) -> block-diag.
        wt = jnp.pad(w.T.astype(jnp.float32),
                     ((0, s_in - w.shape[1]), (0, s_out - w.shape[0])))
        bd = jnp.kron(jnp.eye(pack, dtype=jnp.float32), wt)
        return bd.astype(compute_dtype)

    def bd_bias(b, s_out):
        bp = jnp.pad(b.astype(jnp.float32), (0, s_out - b.shape[0]))
        return jnp.tile(bp, pack).reshape(1, pack * s_out)

    kp = {
        "w1": bd_weight(w1, d_in, s1),   # (pack*d_in, pack*s1)
        "w2": bd_weight(w2, s1, s2),     # (pack*s1,  pack*s2)
        "w3": bd_weight(w3, s2, s3),     # (pack*s2,  pack*s3)
        "b1": bd_bias(b1, s1),           # (1, pack*s1) f32
        "b2": bd_bias(b2, s2),
        "b3": bd_bias(b3, s3),
    }
    return kp


# ----------------------------------------------------------------------------
# Wrapper: 1-D grid over the batch; weights VMEM-resident via constant maps.
# ----------------------------------------------------------------------------
@functools.partial(jax.jit, static_argnames=("out_syms", "block_b"))
def toknet_forward(x, kparams, out_syms, *, block_b=16384):
    B, d_in = x.shape
    pack = kparams["w1"].shape[0] // d_in          # rows packed per lane-row
    out_w = kparams["w3"].shape[1]                 # pack * slot_out (lane-dense)
    slot_out = out_w // pack

    # Batch tile: multiple of 8*pack sublane-rows of the packed layout.
    row_unit = SUBLANE * pack
    tb = _round_up(min(block_b, _round_up(B, row_unit)), row_unit)
    b_pad = _round_up(B, tb)
    # Keep the grid >= 2 (even) so the "parallel" axis uses both TCs on v7x.
    if b_pad // tb == 1 and tb % (2 * row_unit) == 0:
        tb //= 2
        b_pad = _round_up(B, tb)

    xp = x
    if b_pad != B:
        # TODO(synk): pad only the final ragged tile instead of the whole array
        # (a full jnp.pad re-streams the input through HBM once more).
        xp = jnp.pad(xp, ((0, b_pad - B), (0, 0)))

    # Free, contiguous reshape into the packed layout (no data movement).
    xp = xp.reshape(b_pad // pack, pack * d_in)

    const_spec = lambda a: pl.BlockSpec(a.shape, lambda i: (0, 0))

    out_packed = pl.pallas_call(
        toknet_kernel,
        out_shape=jax.ShapeDtypeStruct((b_pad // pack, out_w), jnp.float32),
        grid_spec=pltpu.PrefetchScalarGridSpec(
            num_scalar_prefetch=0,
            grid=(b_pad // tb,),
            in_specs=[
                pl.BlockSpec((tb // pack, pack * d_in), lambda i: (i, 0)),  # x
                const_spec(kparams["w1"]), const_spec(kparams["b1"]),
                const_spec(kparams["w2"]), const_spec(kparams["b2"]),
                const_spec(kparams["w3"]), const_spec(kparams["b3"]),
            ],
            out_specs=pl.BlockSpec((tb // pack, out_w), lambda i: (i, 0)),
        ),
        compiler_params=pltpu.CompilerParams(
            dimension_semantics=("parallel",),
            vmem_limit_bytes=32 * 1024 * 1024,
        ),
    )(xp, kparams["w1"], kparams["b1"], kparams["w2"], kparams["b2"],
      kparams["w3"], kparams["b3"])

    # Free reshape back to per-row layout; slice is a no-op when slot==out_syms
    # and B divides the tile.
    out = out_packed.reshape(b_pad, slot_out)
    return out[:B, :out_syms]


# ----------------------------------------------------------------------------
# Deterministic init mimicking nn.Linear (PyTorch layout: weight (out, in)).
# ----------------------------------------------------------------------------
def init_params(key, in_features, w1, w2, output_syms):
    def linear(k, fan_in, fan_out):
        kw, kb = jax.random.split(k)
        bound = 1.0 / jnp.sqrt(fan_in)
        w = jax.random.uniform(kw, (fan_out, fan_in), jnp.float32, -bound, bound)
        b = jax.random.uniform(kb, (fan_out,), jnp.float32, -bound, bound)
        return w, b

    k1, k2, k3 = jax.random.split(key, 3)
    w1_, b1 = linear(k1, in_features, w1)
    w2_, b2 = linear(k2, w1, w2)
    w3_, b3 = linear(k3, w2, output_syms)
    return {"w1": w1_, "b1": b1, "w2": w2_, "b2": b2, "w3": w3_, "b3": b3}


# Pure-JAX references.
def toknet_ref_f32(x, p):
    h1 = jnp.maximum(x @ p["w1"].T + p["b1"], 0.0)
    h2 = jnp.maximum(h1 @ p["w2"].T + p["b2"], 0.0)
    return h2 @ p["w3"].T + p["b3"]


def toknet_ref_bf16(x, p):
    bf = jnp.bfloat16
    xb = x.astype(bf)
    h1 = jnp.maximum(
        jnp.dot(xb, p["w1"].T.astype(bf), preferred_element_type=jnp.float32)
        + p["b1"], 0.0)
    h2 = jnp.maximum(
        jnp.dot(h1.astype(bf), p["w2"].T.astype(bf),
                preferred_element_type=jnp.float32) + p["b2"], 0.0)
    return jnp.dot(h2.astype(bf), p["w3"].T.astype(bf),
                   preferred_element_type=jnp.float32) + p["b3"]


if __name__ == "__main__":
    # Shapes consistent with the module:
    #   alphabet_size = 16, Params.monograms = 2 -> D_in = 32
    #   w1 = w2 = 8, output_syms = 8.  Batch 512 -> pack=16, tile=256, grid=2.
    alphabet_size = 16
    monograms = 2
    output_syms = 8
    batch = 512
    d_in = alphabet_size * monograms

    key = jax.random.PRNGKey(0)
    kx, kp = jax.random.split(key)
    x = jax.random.normal(kx, (batch, d_in), jnp.float32)
    params = init_params(kp, d_in, 8, 8, output_syms)
    kparams = prepare_kernel_params(params)

    out = toknet_forward(x, kparams, output_syms)
    out = jax.block_until_ready(out)
    assert out.shape == (batch, output_syms)

    # Tight check against a reference that follows the same bf16 matmul path.
    ref_bf16 = toknet_ref_bf16(x, params)
    assert jnp.allclose(out, ref_bf16, atol=1e-2, rtol=1e-2), "mismatch vs bf16 ref"

    # Loose check against the original f32 semantics (bf16 rounding only).
    ref_f32 = toknet_ref_f32(x, params)
    assert jnp.allclose(out, ref_f32, atol=5e-2, rtol=5e-2), "mismatch vs f32 ref"

    print("KERNEL_OK")
</pallas_src>

<mosaic_0001>
module attributes {stable_mosaic.version = 11 : i64} {
  func.func @toknet_kernel(%arg0: i32, %arg1: memref<16x512xf32, #tpu.memory_space<vmem>>, %arg2: memref<512x128xbf16, #tpu.memory_space<vmem>>, %arg3: memref<1x128xf32, #tpu.memory_space<vmem>>, %arg4: memref<128x128xbf16, #tpu.memory_space<vmem>>, %arg5: memref<1x128xf32, #tpu.memory_space<vmem>>, %arg6: memref<128x128xbf16, #tpu.memory_space<vmem>>, %arg7: memref<1x128xf32, #tpu.memory_space<vmem>>, %arg8: memref<16x128xf32, #tpu.memory_space<vmem>>) attributes {dimension_semantics = [#tpu.dimension_semantics<parallel>], iteration_bounds = array<i64: 2>, scalar_prefetch = 0 : i64, scratch_operands = 0 : i64, tpu.core_type = #tpu.core_type<tc>, window_params = [{transform_indices = @transform_0, window_bounds = array<i64: 16, 512>}, {pipeline_mode = #tpu.pipeline_mode<synchronous>, transform_indices = @transform_1, window_bounds = array<i64: 512, 128>}, {pipeline_mode = #tpu.pipeline_mode<synchronous>, transform_indices = @transform_2, window_bounds = array<i64: 1, 128>}, {pipeline_mode = #tpu.pipeline_mode<synchronous>, transform_indices = @transform_3, window_bounds = array<i64: 128, 128>}, {pipeline_mode = #tpu.pipeline_mode<synchronous>, transform_indices = @transform_4, window_bounds = array<i64: 1, 128>}, {pipeline_mode = #tpu.pipeline_mode<synchronous>, transform_indices = @transform_5, window_bounds = array<i64: 128, 128>}, {pipeline_mode = #tpu.pipeline_mode<synchronous>, transform_indices = @transform_6, window_bounds = array<i64: 1, 128>}, {transform_indices = @transform_7, window_bounds = array<i64: 16, 128>}]} {
    %c0 = arith.constant 0 : index
    %c0_0 = arith.constant 0 : index
    %0 = vector.load %arg1[%c0, %c0_0] : memref<16x512xf32, #tpu.memory_space<vmem>>, vector<16x512xf32>
    %1 = arith.truncf %0 : vector<16x512xf32> to vector<16x512xbf16>
    %c0_1 = arith.constant 0 : index
    %c0_2 = arith.constant 0 : index
    %2 = vector.load %arg2[%c0_1, %c0_2] : memref<512x128xbf16, #tpu.memory_space<vmem>>, vector<512x128xbf16>
    %cst = arith.constant dense<0.000000e+00> : vector<16x128xf32>
    %3 = tpu.matmul %1, %2, %cst {dimension_numbers = #tpu.dot_dimension_numbers<[1], [0], [0], [1], [0, 0, 1, 1], [], []>} : vector<16x512xbf16>, vector<512x128xbf16>, vector<16x128xf32> -> vector<16x128xf32>
    %c0_3 = arith.constant 0 : index
    %c0_4 = arith.constant 0 : index
    %4 = vector.load %arg3[%c0_3, %c0_4] : memref<1x128xf32, #tpu.memory_space<vmem>>, vector<1x128xf32>
    %5 = vector.broadcast %4 : vector<1x128xf32> to vector<16x128xf32>
    %6 = arith.addf %3, %5 : vector<16x128xf32>
    %cst_5 = arith.constant 0.000000e+00 : f32
    %7 = vector.broadcast %cst_5 : f32 to vector<16x128xf32>
    %8 = arith.maximumf %6, %7 : vector<16x128xf32>
    %9 = arith.truncf %8 : vector<16x128xf32> to vector<16x128xbf16>
    %c0_6 = arith.constant 0 : index
    %c0_7 = arith.constant 0 : index
    %10 = vector.load %arg4[%c0_6, %c0_7] : memref<128x128xbf16, #tpu.memory_space<vmem>>, vector<128x128xbf16>
    %cst_8 = arith.constant dense<0.000000e+00> : vector<16x128xf32>
    %11 = tpu.matmul %9, %10, %cst_8 {dimension_numbers = #tpu.dot_dimension_numbers<[1], [0], [0], [1], [0, 0, 1, 1], [], []>} : vector<16x128xbf16>, vector<128x128xbf16>, vector<16x128xf32> -> vector<16x128xf32>
    %c0_9 = arith.constant 0 : index
    %c0_10 = arith.constant 0 : index
    %12 = vector.load %arg5[%c0_9, %c0_10] : memref<1x128xf32, #tpu.memory_space<vmem>>, vector<1x128xf32>
    %13 = vector.broadcast %12 : vector<1x128xf32> to vector<16x128xf32>
    %14 = arith.addf %11, %13 : vector<16x128xf32>
    %cst_11 = arith.constant 0.000000e+00 : f32
    %15 = vector.broadcast %cst_11 : f32 to vector<16x128xf32>
    %16 = arith.maximumf %14, %15 : vector<16x128xf32>
    %17 = arith.truncf %16 : vector<16x128xf32> to vector<16x128xbf16>
    %c0_12 = arith.constant 0 : index
    %c0_13 = arith.constant 0 : index
    %18 = vector.load %arg6[%c0_12, %c0_13] : memref<128x128xbf16, #tpu.memory_space<vmem>>, vector<128x128xbf16>
    %cst_14 = arith.constant dense<0.000000e+00> : vector<16x128xf32>
    %19 = tpu.matmul %17, %18, %cst_14 {dimension_numbers = #tpu.dot_dimension_numbers<[1], [0], [0], [1], [0, 0, 1, 1], [], []>} : vector<16x128xbf16>, vector<128x128xbf16>, vector<16x128xf32> -> vector<16x128xf32>
    %c0_15 = arith.constant 0 : index
    %c0_16 = arith.constant 0 : index
    %20 = vector.load %arg7[%c0_15, %c0_16] : memref<1x128xf32, #tpu.memory_space<vmem>>, vector<1x128xf32>
    %21 = vector.broadcast %20 : vector<1x128xf32> to vector<16x128xf32>
    %22 = arith.addf %19, %21 : vector<16x128xf32>
    %c0_17 = arith.constant 0 : index
    %c0_18 = arith.constant 0 : index
    %23 = vector.load %arg8[%c0_17, %c0_18] : memref<16x128xf32, #tpu.memory_space<vmem>>, vector<16x128xf32>
    tpu.vector_store %arg8[%c0_17, %c0_18], %22 {strides = array<i32>} : memref<16x128xf32, #tpu.memory_space<vmem>>, vector<16x128xf32>,
    return
  }
  func.func @transform_0(%arg0: i32) -> (i32, i32) {
    %c0_i32 = arith.constant 0 : i32
    %c0_i32_0 = arith.constant 0 : i32
    return %arg0, %c0_i32 : i32, i32
  }
  func.func @transform_1(%arg0: i32) -> (i32, i32) {
    %c0_i32 = arith.constant 0 : i32
    %c0_i32_0 = arith.constant 0 : i32
    %c0_i32_1 = arith.constant 0 : i32
    return %c0_i32, %c0_i32_0 : i32, i32
  }
  func.func @transform_2(%arg0: i32) -> (i32, i32) {
    %c0_i32 = arith.constant 0 : i32
    %c0_i32_0 = arith.constant 0 : i32
    %c0_i32_1 = arith.constant 0 : i32
    return %c0_i32, %c0_i32_0 : i32, i32
  }
  func.func @transform_3(%arg0: i32) -> (i32, i32) {
    %c0_i32 = arith.constant 0 : i32
    %c0_i32_0 = arith.constant 0 : i32
    %c0_i32_1 = arith.constant 0 : i32
    return %c0_i32, %c0_i32_0 : i32, i32
  }
  func.func @transform_4(%arg0: i32) -> (i32, i32) {
    %c0_i32 = arith.constant 0 : i32
    %c0_i32_0 = arith.constant 0 : i32
    %c0_i32_1 = arith.constant 0 : i32
    return %c0_i32, %c0_i32_0 : i32, i32
  }
  func.func @transform_5(%arg0: i32) -> (i32, i32) {
    %c0_i32 = arith.constant 0 : i32
    %c0_i32_0 = arith.constant 0 : i32
    %c0_i32_1 = arith.constant 0 : i32
    return %c0_i32, %c0_i32_0 : i32, i32
  }
  func.func @transform_6(%arg0: i32) -> (i32, i32) {
    %c0_i32 = arith.constant 0 : i32
    %c0_i32_0 = arith.constant 0 : i32
    %c0_i32_1 = arith.constant 0 : i32
    return %c0_i32, %c0_i32_0 : i32, i32
  }
  func.func @transform_7(%arg0: i32) -> (i32, i32) {
    %c0_i32 = arith.constant 0 : i32
    %c0_i32_0 = arith.constant 0 : i32
    return %arg0, %c0_i32 : i32, i32
  }
}

</mosaic_0001>

<llo_original>
// kernel: toknet_forward.1
$region0: #{toknet_forward.1}
  #allocation0 [shape = 'u32[]', space=smem, size = 0x4, offset = 0x4, fixed_abs, tag = 'smem constant byte address 0x4 - core index']
  #allocation1 [shape = 'u32[144,128]{1,0:T(1,128)}', space=vmem, size = 0x12000, scoped, tag = 'internal scratch']
  %s0 = inlined_call_operand.vmem [shape: f32[32,512], index: 0, kind: input, shape index: {}]
  %s1 = inlined_call_operand.vmem [shape: bf16[512,128], index: 1, kind: input, shape index: {}]
  %s2 = inlined_call_operand.vmem [shape: f32[1,128], index: 2, kind: input, shape index: {}]
  %s3 = inlined_call_operand.vmem [shape: bf16[128,128], index: 3, kind: input, shape index: {}]
  %s4 = inlined_call_operand.vmem [shape: f32[1,128], index: 4, kind: input, shape index: {}]
  %s5 = inlined_call_operand.vmem [shape: bf16[128,128], index: 5, kind: input, shape index: {}]
  %s6 = inlined_call_operand.vmem [shape: f32[1,128], index: 6, kind: input, shape index: {}]
  %s7 = inlined_call_operand.vmem [shape: f32[32,128], index: 7, kind: output, shape index: {}]
  %s8 = sld [smem:[#allocation0]]
  $region61: #{toknet_forward.1} parent=0
    _
  %s10 = ssub.s32 1, %s8
  %s11 = scalar_select 0, %s10, %s8
  loop: start=0, step=1, limit=4
  $region2: #{toknet_forward.1} parent=0 // loop_pre_header
    _
  $region3: #{toknet_forward.1} parent=0 // loop_header
    %s13 = sphi 0, %s17
    %p14 = scmp.ge.s32.totalorder %s13, 4
    %s23 = sphi 0, %s25
    %s26 = sphi 0, %s23
    %s27 = sphi 0, %s26
    %s43 = sphi 0, %s27
    %s47 = sphi 0, %s47
    %s49 = sphi 0, %s47
    %s50 = sphi 0, %s49
    %s64 = sphi 0, %s50
    %s68 = sphi 0, %s68
    %s70 = sphi 0, %s68
    %s71 = sphi 0, %s70
    %s85 = sphi 0, %s71
    %s89 = sphi 0, %s89
    %s91 = sphi 0, %s89
    %s92 = sphi 0, %s91
    %s106 = sphi 0, %s92
    %s110 = sphi 0, %s110
    %s112 = sphi 0, %s110
    %s113 = sphi 0, %s112
    %s127 = sphi 0, %s113
    %s131 = sphi 0, %s131
    %s133 = sphi 0, %s131
    %s134 = sphi 0, %s133
    %s148 = sphi 0, %s134
    %s152 = sphi 0, %s152
    %s154 = sphi 0, %s152
    %s155 = sphi 0, %s154
    %s169 = sphi 0, %s155
    %s175 = sphi 0, %s177
    %s178 = sphi 0, %s175
    %s179 = sphi 0, %s178
    %s195 = sphi 0, %s179
  $region4: #{toknet_forward.1} parent=0 // loop_header_branch
    %16 = sbr.rel (%p14) target = $region8
  $region5: #{toknet_forward.1} parent=0 // loop_body
    %s18 = ssub.s32 %s13, 1
    %s19 = ssub.s32 %s13, 2
    %s20 = sadd.s32 %s13, 1
    %s21 = ssub.s32 %s13, %s20
    %p22 = scmp.eq.s32.totalorder %s21, 0
    %s24 = sadd.s32 %s23, 1
    %s25 = scalar_select %p22, %s23, %s24
    %p28 = pneg %p22
    %p29 = scmp.eq.s32.totalorder %s13, 1
    %p30 = por %p28, %p29
    %p31 = scmp.ne.s32.totalorder %s23, %s26
    %p32 = scmp.eq.s32.totalorder %s13, 0
    %p33 = por %p31, %p32
    %p34 = scmp.ne.s32.totalorder %s23, %s26
    %p35 = scmp.eq.s32.totalorder %s18, 1
    %p36 = por %p34, %p35
    %p37 = scmp.ne.s32.totalorder %s26, %s27
    %p38 = scmp.eq.s32.totalorder %s18, 0
    %p39 = por %p37, %p38
    %p40 = scmp.ne.s32.totalorder %s26, %s27
    %p41 = scmp.eq.s32.totalorder %s19, 1
    %p42 = por %p40, %p41
    %p44 = scmp.ne.s32.totalorder %s27, %s43
    %p45 = scmp.eq.s32.totalorder %s19, 0
    %p46 = por %p44, %p45
    %s48 = sadd.s32 %s47, 1
    %p51 = scmp.eq.s32.totalorder %s13, 1
    %p52 = scmp.ne.s32.totalorder %s47, %s49
    %p53 = scmp.eq.s32.totalorder %s13, 0
    %p54 = por %p52, %p53
    %p55 = scmp.ne.s32.totalorder %s47, %s49
    %p56 = scmp.eq.s32.totalorder %s18, 1
    %p57 = por %p55, %p56
    %p58 = scmp.ne.s32.totalorder %s49, %s50
    %p59 = scmp.eq.s32.totalorder %s18, 0
    %p60 = por %p58, %p59
    %p61 = scmp.ne.s32.totalorder %s49, %s50
    %p62 = scmp.eq.s32.totalorder %s19, 1
    %p63 = por %p61, %p62
    %p65 = scmp.ne.s32.totalorder %s50, %s64
    %p66 = scmp.eq.s32.totalorder %s19, 0
    %p67 = por %p65, %p66
    %s69 = sadd.s32 %s68, 1
    %p72 = scmp.eq.s32.totalorder %s13, 1
    %p73 = scmp.ne.s32.totalorder %s68, %s70
    %p74 = scmp.eq.s32.totalorder %s13, 0
    %p75 = por %p73, %p74
    %p76 = scmp.ne.s32.totalorder %s68, %s70
    %p77 = scmp.eq.s32.totalorder %s18, 1
    %p78 = por %p76, %p77
    %p79 = scmp.ne.s32.totalorder %s70, %s71
    %p80 = scmp.eq.s32.totalorder %s18, 0
    %p81 = por %p79, %p80
    %p82 = scmp.ne.s32.totalorder %s70, %s71
    %p83 = scmp.eq.s32.totalorder %s19, 1
    %p84 = por %p82, %p83
    %p86 = scmp.ne.s32.totalorder %s71, %s85
    %p87 = scmp.eq.s32.totalorder %s19, 0
    %p88 = por %p86, %p87
    %s90 = sadd.s32 %s89, 1
    %p93 = scmp.eq.s32.totalorder %s13, 1
    %p94 = scmp.ne.s32.totalorder %s89, %s91
    %p95 = scmp.eq.s32.totalorder %s13, 0
    %p96 = por %p94, %p95
    %p97 = scmp.ne.s32.totalorder %s89, %s91
    %p98 = scmp.eq.s32.totalorder %s18, 1
    %p99 = por %p97, %p98
    %p100 = scmp.ne.s32.totalorder %s91, %s92
    %p101 = scmp.eq.s32.totalorder %s18, 0
    %p102 = por %p100, %p101
    %p103 = scmp.ne.s32.totalorder %s91, %s92
    %p104 = scmp.eq.s32.totalorder %s19, 1
    %p105 = por %p103, %p104
    %p107 = scmp.ne.s32.totalorder %s92, %s106
    %p108 = scmp.eq.s32.totalorder %s19, 0
    %p109 = por %p107, %p108
    %s111 = sadd.s32 %s110, 1
    %p114 = scmp.eq.s32.totalorder %s13, 1
    %p115 = scmp.ne.s32.totalorder %s110, %s112
    %p116 = scmp.eq.s32.totalorder %s13, 0
    %p117 = por %p115, %p116
    %p118 = scmp.ne.s32.totalorder %s110, %s112
    %p119 = scmp.eq.s32.totalorder %s18, 1
    %p120 = por %p118, %p119
    %p121 = scmp.ne.s32.totalorder %s112, %s113
    %p122 = scmp.eq.s32.totalorder %s18, 0
    %p123 = por %p121, %p122
    %p124 = scmp.ne.s32.totalorder %s112, %s113
    %p125 = scmp.eq.s32.totalorder %s19, 1
    %p126 = por %p124, %p125
    %p128 = scmp.ne.s32.totalorder %s113, %s127
    %p129 = scmp.eq.s32.totalorder %s19, 0
    %p130 = por %p128, %p129
    %s132 = sadd.s32 %s131, 1
    %p135 = scmp.eq.s32.totalorder %s13, 1
    %p136 = scmp.ne.s32.totalorder %s131, %s133
    %p137 = scmp.eq.s32.totalorder %s13, 0
    %p138 = por %p136, %p137
    %p139 = scmp.ne.s32.totalorder %s131, %s133
    %p140 = scmp.eq.s32.totalorder %s18, 1
    %p141 = por %p139, %p140
    %p142 = scmp.ne.s32.totalorder %s133, %s134
    %p143 = scmp.eq.s32.totalorder %s18, 0
    %p144 = por %p142, %p143
    %p145 = scmp.ne.s32.totalorder %s133, %s134
    %p146 = scmp.eq.s32.totalorder %s19, 1
    %p147 = por %p145, %p146
    %p149 = scmp.ne.s32.totalorder %s134, %s148
    %p150 = scmp.eq.s32.totalorder %s19, 0
    %p151 = por %p149, %p150
    %s153 = sadd.s32 %s152, 1
    %p156 = scmp.eq.s32.totalorder %s13, 1
    %p157 = scmp.ne.s32.totalorder %s152, %s154
    %p158 = scmp.eq.s32.totalorder %s13, 0
    %p159 = por %p157, %p158
    %p160 = scmp.ne.s32.totalorder %s152, %s154
    %p161 = scmp.eq.s32.totalorder %s18, 1
    %p162 = por %p160, %p161
    %p163 = scmp.ne.s32.totalorder %s154, %s155
    %p164 = scmp.eq.s32.totalorder %s18, 0
    %p165 = por %p163, %p164
    %p166 = scmp.ne.s32.totalorder %s154, %s155
    %p167 = scmp.eq.s32.totalorder %s19, 1
    %p168 = por %p166, %p167
    %p170 = scmp.ne.s32.totalorder %s155, %s169
    %p171 = scmp.eq.s32.totalorder %s19, 0
    %p172 = por %p170, %p171
    %s173 = ssub.s32 %s13, %s20
    %p174 = scmp.eq.s32.totalorder %s173, 0
    %s176 = sadd.s32 %s175, 1
    %s177 = scalar_select %p174, %s175, %s176
    %p180 = pneg %p174
    %p181 = scmp.eq.s32.totalorder %s13, 1
    %p182 = por %p180, %p181
    %p183 = scmp.ne.s32.totalorder %s175, %s178
    %p184 = scmp.eq.s32.totalorder %s13, 0
    %p185 = por %p183, %p184
    %p186 = scmp.ne.s32.totalorder %s175, %s178
    %p187 = scmp.eq.s32.totalorder %s18, 1
    %p188 = por %p186, %p187
    %p189 = scmp.ne.s32.totalorder %s178, %s179
    %p190 = scmp.eq.s32.totalorder %s18, 0
    %p191 = por %p189, %p190
    %p192 = scmp.ne.s32.totalorder %s178, %s179
    %p193 = scmp.eq.s32.totalorder %s19, 1
    %p194 = por %p192, %p193
    %p196 = scmp.ne.s32.totalorder %s179, %s195
    %p197 = scmp.eq.s32.totalorder %s19, 0
    %p198 = por %p196, %p197
    %p199 = scmp.le.s32.totalorder 1, %s13
    %p200 = scmp.lt.s32.totalorder %s13, 3
    %p201 = pnand %p199, %p200
    %p202 = pneg %p201
    // Predicated region
    $region9: #{toknet_forward.1} parent=5 // pred_check
      _
    $region10: #{toknet_forward.1} parent=5 // pred_check_branch
      %204 = sbr.rel (%p201) target = $region12
    $region11: #{toknet_forward.1} parent=5 // pred_region
      %s205 = ssub.s32 %s13, 1
      // Predicated region
      $region13: #{toknet_forward.1} parent=11 // pred_check
        %p206 = pneg %p60
      $region14: #{toknet_forward.1} parent=11 // pred_check_branch
        %208 = sbr.rel (%p206) target = $region16
      $region15: #{toknet_forward.1} parent=11 // pred_region
        _
      $region16: #{toknet_forward.1} parent=11 // pred_fallthru
        _
      // Predicated region
      $region17: #{toknet_forward.1} parent=11 // pred_check
        %p209 = pneg %p81
      $region18: #{toknet_forward.1} parent=11 // pred_check_branch
        %211 = sbr.rel (%p209) target = $region20
      $region19: #{toknet_forward.1} parent=11 // pred_region
        _
      $region20: #{toknet_forward.1} parent=11 // pred_fallthru
        _
      // Predicated region
      $region21: #{toknet_forward.1} parent=11 // pred_check
        %p212 = pneg %p102
      $region22: #{toknet_forward.1} parent=11 // pred_check_branch
        %214 = sbr.rel (%p212) target = $region24
      $region23: #{toknet_forward.1} parent=11 // pred_region
        _
      $region24: #{toknet_forward.1} parent=11 // pred_fallthru
        _
      // Predicated region
      $region25: #{toknet_forward.1} parent=11 // pred_check
        %p215 = pneg %p123
      $region26: #{toknet_forward.1} parent=11 // pred_check_branch
        %217 = sbr.rel (%p215) target = $region28
      $region27: #{toknet_forward.1} parent=11 // pred_region
        _
      $region28: #{toknet_forward.1} parent=11 // pred_fallthru
        _
      // Predicated region
      $region29: #{toknet_forward.1} parent=11 // pred_check
        %p218 = pneg %p144
      $region30: #{toknet_forward.1} parent=11 // pred_check_branch
        %220 = sbr.rel (%p218) target = $region32
      $region31: #{toknet_forward.1} parent=11 // pred_region
        _
      $region32: #{toknet_forward.1} parent=11 // pred_fallthru
        _
      // Predicated region
      $region33: #{toknet_forward.1} parent=11 // pred_check
        %p221 = pneg %p165
      $region34: #{toknet_forward.1} parent=11 // pred_check_branch
        %223 = sbr.rel (%p221) target = $region36
      $region35: #{toknet_forward.1} parent=11 // pred_region
        _
      $region36: #{toknet_forward.1} parent=11 // pred_fallthru
        _
    $region12: #{toknet_forward.1} parent=5 // pred_fallthru
      _
    %p224 = scmp.lt.s32.totalorder %s13, 2
    // Predicated region
    $region37: #{toknet_forward.1} parent=5 // pred_check
      %p225 = pneg %p224
    $region38: #{toknet_forward.1} parent=5 // pred_check_branch
      %227 = sbr.rel (%p225) target = $region40
    $region39: #{toknet_forward.1} parent=5 // pred_region
      // Predicated region
      $region41: #{toknet_forward.1} parent=39 // pred_check
        %p228 = pneg %p33
      $region42: #{toknet_forward.1} parent=39 // pred_check_branch
        %230 = sbr.rel (%p228) target = $region44
      $region43: #{toknet_forward.1} parent=39 // pred_region
        %s231 = smul.u32 2, %s13
        %p232 = scmp.lt.s32.totalorder %s231, 3
        %s233 = scalar_select %p232, %s231, 3
        %s234 = smul.addr %s233, 4
        %s235 = smul.addr %s234, 8
        %s236 = scalar_lea.vmem %s0, %s235
        %s237 = smul.u32 2, %s13
      $region44: #{toknet_forward.1} parent=39 // pred_fallthru
        _
    $region40: #{toknet_forward.1} parent=5 // pred_fallthru
      _
    %p238 = scmp.le.s32.totalorder 1, %s13
    %p239 = scmp.lt.s32.totalorder %s13, 3
    %p240 = pnand %p238, %p239
    %p241 = pneg %p240
    // Predicated region
    $region45: #{toknet_forward.1} parent=5 // pred_check
      _
    $region46: #{toknet_forward.1} parent=5 // pred_check_branch
      %243 = sbr.rel (%p240) target = $region48
    $region47: #{toknet_forward.1} parent=5 // pred_region
      %s244 = ssub.s32 %s13, 1
      %s245 = smul.u32 2, %s18
      %p246 = scmp.lt.s32.totalorder %s245, 3
      %s247 = scalar_select %p246, %s245, 3
      %s248 = smul.addr %s247, 4
      %s249 = smul.addr %s248, 8
      %s250 = scalar_lea.vmem %s0, %s249
      %p251 = pneg %p39
      %p252 = pneg %p36
      %p253 = pneg %p60
      %p254 = pneg %p57
      %p255 = pneg %p81
      %p256 = pneg %p78
      %p257 = pneg %p102
      %p258 = pneg %p99
      %p259 = pneg %p123
      %p260 = pneg %p120
      %p261 = pneg %p144
      %p262 = pneg %p141
      %p263 = pneg %p165
      %p264 = pneg %p162
      %p265 = pneg %p191
      %p266 = pneg %p188
      %s267 = smul.u32 2, %s18
      %p268 = scmp.lt.s32.totalorder %s267, 3
      %s269 = scalar_select %p268, %s267, 3
      %s270 = smul.addr %s269, 8
      %s271 = scalar_lea.vmem %s7, %s270
      %s272 = smul.u32 2, %s18
      %p273 = scmp.lt.s32.totalorder %s272, 3
      %s274 = scalar_select %p273, %s272, 3
      %s275 = smul.addr %s274, 4
      %s276 = smul.addr %s275, 8
      %s277 = scalar_lea.vmem %s0, %s276
      %s278 = smul.u32 2, %s18
      %s279 = smul.u32 2, %s18
      %p280 = scmp.lt.s32.totalorder %s279, 3
      %s281 = scalar_select %p280, %s279, 3
      %s282 = smul.addr %s281, 8
      %s283 = scalar_lea.vmem %s7, %s282
      %s284 = smul.u32 2, %s18
      %v286 = vld [vmem:[%s277] sm:$0xff]
      %v287 = vld [vmem:[%s277 + $0x8] sm:$0xff]
      %v288 = vld [vmem:[%s277 + $0x10] sm:$0xff]
      %v289 = vld [vmem:[%s277 + $0x18] sm:$0xff]
      %v290 = vld [vmem:[%s277 + $0x20] sm:$0xff]
      %v291 = vld [vmem:[%s277 + $0x28] sm:$0xff]
      %v292 = vld [vmem:[%s277 + $0x30] sm:$0xff]
      %v293 = vld [vmem:[%s277 + $0x38] sm:$0xff]
      %v294 = vpack.c.bf16 %v290, %v286
      %v295 = vpack.c.bf16 %v291, %v287
      %v296 = vpack.c.bf16 %v292, %v288
      %v297 = vpack.c.bf16 %v293, %v289
      %v298 = vld [vmem:[%s1] sm:$0xf]
      %v299 = vld [vmem:[%s1 + $0x4] sm:$0xf]
      %v300 = vld [vmem:[%s1 + $0x8] sm:$0xf]
      %v301 = vld [vmem:[%s1 + $0xc] sm:$0xf]
      %v302 = vld [vmem:[%s1 + $0x10] sm:$0xf]
      %v303 = vld [vmem:[%s1 + $0x14] sm:$0xf]
      %v304 = vld [vmem:[%s1 + $0x18] sm:$0xf]
      %v305 = vld [vmem:[%s1 + $0x1c] sm:$0xf]
      %v306 = vld [vmem:[%s1 + $0x20] sm:$0xf]
      %v307 = vld [vmem:[%s1 + $0x24] sm:$0xf]
      %v308 = vld [vmem:[%s1 + $0x28] sm:$0xf]
      %v309 = vld [vmem:[%s1 + $0x2c] sm:$0xf]
      %v310 = vld [vmem:[%s1 + $0x30] sm:$0xf]
      %v311 = vld [vmem:[%s1 + $0x34] sm:$0xf]
      %v312 = vld [vmem:[%s1 + $0x38] sm:$0xf]
      %v313 = vld [vmem:[%s1 + $0x3c] sm:$0xf]
      %v314 = vld [vmem:[%s1 + $0x40] sm:$0xf]
      %v315 = vld [vmem:[%s1 + $0x44] sm:$0xf]
      %v316 = vld [vmem:[%s1 + $0x48] sm:$0xf]
      %v317 = vld [vmem:[%s1 + $0x4c] sm:$0xf]
      %v318 = vld [vmem:[%s1 + $0x50] sm:$0xf]
      %v319 = vld [vmem:[%s1 + $0x54] sm:$0xf]
      %v320 = vld [vmem:[%s1 + $0x58] sm:$0xf]
      %v321 = vld [vmem:[%s1 + $0x5c] sm:$0xf]
      %v322 = vld [vmem:[%s1 + $0x60] sm:$0xf]
      %v323 = vld [vmem:[%s1 + $0x64] sm:$0xf]
      %v324 = vld [vmem:[%s1 + $0x68] sm:$0xf]
      %v325 = vld [vmem:[%s1 + $0x6c] sm:$0xf]
      %v326 = vld [vmem:[%s1 + $0x70] sm:$0xf]
      %v327 = vld [vmem:[%s1 + $0x74] sm:$0xf]
      %v328 = vld [vmem:[%s1 + $0x78] sm:$0xf]
      %v329 = vld [vmem:[%s1 + $0x7c] sm:$0xf]
      %v330 = vld [vmem:[%s1 + $0x80] sm:$0xf]
      %v331 = vld [vmem:[%s1 + $0x84] sm:$0xf]
      %v332 = vld [vmem:[%s1 + $0x88] sm:$0xf]
      %v333 = vld [vmem:[%s1 + $0x8c] sm:$0xf]
      %v334 = vld [vmem:[%s1 + $0x90] sm:$0xf]
      %v335 = vld [vmem:[%s1 + $0x94] sm:$0xf]
      %v336 = vld [vmem:[%s1 + $0x98] sm:$0xf]
      %v337 = vld [vmem:[%s1 + $0x9c] sm:$0xf]
      %v338 = vld [vmem:[%s1 + $0xa0] sm:$0xf]
      %v339 = vld [vmem:[%s1 + $0xa4] sm:$0xf]
      %v340 = vld [vmem:[%s1 + $0xa8] sm:$0xf]
      %v341 = vld [vmem:[%s1 + $0xac] sm:$0xf]
      %v342 = vld [vmem:[%s1 + $0xb0] sm:$0xf]
      %v343 = vld [vmem:[%s1 + $0xb4] sm:$0xf]
      %v344 = vld [vmem:[%s1 + $0xb8] sm:$0xf]
      %v345 = vld [vmem:[%s1 + $0xbc] sm:$0xf]
      %v346 = vld [vmem:[%s1 + $0xc0] sm:$0xf]
      %v347 = vld [vmem:[%s1 + $0xc4] sm:$0xf]
      %v348 = vld [vmem:[%s1 + $0xc8] sm:$0xf]
      %v349 = vld [vmem:[%s1 + $0xcc] sm:$0xf]
      %v350 = vld [vmem:[%s1 + $0xd0] sm:$0xf]
      %v351 = vld [vmem:[%s1 + $0xd4] sm:$0xf]
      %v352 = vld [vmem:[%s1 + $0xd8] sm:$0xf]
      %v353 = vld [vmem:[%s1 + $0xdc] sm:$0xf]
      %v354 = vld [vmem:[%s1 + $0xe0] sm:$0xf]
      %v355 = vld [vmem:[%s1 + $0xe4] sm:$0xf]
      %v356 = vld [vmem:[%s1 + $0xe8] sm:$0xf]
      %v357 = vld [vmem:[%s1 + $0xec] sm:$0xf]
      %v358 = vld [vmem:[%s1 + $0xf0] sm:$0xf]
      %v359 = vld [vmem:[%s1 + $0xf4] sm:$0xf]
      %v360 = vld [vmem:[%s1 + $0xf8] sm:$0xf]
      %v361 = vld [vmem:[%s1 + $0xfc] sm:$0xf]
      %v362 = vld [vmem:[%s2] sm:$0x1]
      %v364 = vlaneseq
      %v365 = vshrl.u32 %v364, 7
      %v366 = vsub.s32 0, %v365
      %v367 = vrot.slane %v362, %v366
      %v433 = vunpack.c.l.b16 %v298
      %v434 = vunpack.c.l.b16 %v299
      %v435 = vunpack.c.l.b16 %v300
      %v436 = vunpack.c.l.b16 %v301
      %v437 = vunpack.c.l.b16 %v302
      %v438 = vunpack.c.l.b16 %v303
      %v439 = vunpack.c.l.b16 %v304
      %v440 = vunpack.c.l.b16 %v305
      %v441 = vunpack.c.l.b16 %v306
      %v442 = vunpack.c.l.b16 %v307
      %v443 = vunpack.c.l.b16 %v308
      %v444 = vunpack.c.l.b16 %v309
      %v445 = vunpack.c.l.b16 %v310
      %v446 = vunpack.c.l.b16 %v311
      %v447 = vunpack.c.l.b16 %v312
      %v448 = vunpack.c.l.b16 %v313
      %v449 = vunpack.c.l.b16 %v314
      %v450 = vunpack.c.l.b16 %v315
      %v451 = vunpack.c.l.b16 %v316
      %v452 = vunpack.c.l.b16 %v317
      %v453 = vunpack.c.l.b16 %v318
      %v454 = vunpack.c.l.b16 %v319
      %v455 = vunpack.c.l.b16 %v320
      %v456 = vunpack.c.l.b16 %v321
      %v457 = vunpack.c.l.b16 %v322
      %v458 = vunpack.c.l.b16 %v323
      %v459 = vunpack.c.l.b16 %v324
      %v460 = vunpack.c.l.b16 %v325
      %v461 = vunpack.c.l.b16 %v326
      %v462 = vunpack.c.l.b16 %v327
      %v463 = vunpack.c.l.b16 %v328
      %v464 = vunpack.c.l.b16 %v329
      %v465 = vunpack.c.l.b16 %v330
      %v466 = vunpack.c.l.b16 %v331
      %v467 = vunpack.c.l.b16 %v332
      %v468 = vunpack.c.l.b16 %v333
      %v469 = vunpack.c.l.b16 %v334
      %v470 = vunpack.c.l.b16 %v335
      %v471 = vunpack.c.l.b16 %v336
      %v472 = vunpack.c.l.b16 %v337
      %v473 = vunpack.c.l.b16 %v338
      %v474 = vunpack.c.l.b16 %v339
      %v475 = vunpack.c.l.b16 %v340
      %v476 = vunpack.c.l.b16 %v341
      %v477 = vunpack.c.l.b16 %v342
      %v478 = vunpack.c.l.b16 %v343
      %v479 = vunpack.c.l.b16 %v344
      %v480 = vunpack.c.l.b16 %v345
      %v481 = vunpack.c.l.b16 %v346
      %v482 = vunpack.c.l.b16 %v347
      %v483 = vunpack.c.l.b16 %v348
      %v484 = vunpack.c.l.b16 %v349
      %v485 = vunpack.c.l.b16 %v350
      %v486 = vunpack.c.l.b16 %v351
      %v487 = vunpack.c.l.b16 %v352
      %v488 = vunpack.c.l.b16 %v353
      %v489 = vunpack.c.l.b16 %v354
      %v490 = vunpack.c.l.b16 %v355
      %v491 = vunpack.c.l.b16 %v356
      %v492 = vunpack.c.l.b16 %v357
      %v493 = vunpack.c.l.b16 %v358
      %v494 = vunpack.c.l.b16 %v359
      %v495 = vunpack.c.l.b16 %v360
      %v496 = vunpack.c.l.b16 %v361
      %v497 = vpack.c.b16 %v434, %v433
      %v498 = vpack.c.b16 %v436, %v435
      %v499 = vpack.c.b16 %v438, %v437
      %v500 = vpack.c.b16 %v440, %v439
      %v501 = vpack.c.b16 %v442, %v441
      %v502 = vpack.c.b16 %v444, %v443
      %v503 = vpack.c.b16 %v446, %v445
      %v504 = vpack.c.b16 %v448, %v447
      %v505 = vpack.c.b16 %v450, %v449
      %v506 = vpack.c.b16 %v452, %v451
      %v507 = vpack.c.b16 %v454, %v453
      %v508 = vpack.c.b16 %v456, %v455
      %v509 = vpack.c.b16 %v458, %v457
      %v510 = vpack.c.b16 %v460, %v459
      %v511 = vpack.c.b16 %v462, %v461
      %v512 = vpack.c.b16 %v464, %v463
      %v513 = vpack.c.b16 %v466, %v465
      %v514 = vpack.c.b16 %v468, %v467
      %v515 = vpack.c.b16 %v470, %v469
      %v516 = vpack.c.b16 %v472, %v471
      %v517 = vpack.c.b16 %v474, %v473
      %v518 = vpack.c.b16 %v476, %v475
      %v519 = vpack.c.b16 %v478, %v477
      %v520 = vpack.c.b16 %v480, %v479
      %v521 = vpack.c.b16 %v482, %v481
      %v522 = vpack.c.b16 %v484, %v483
      %v523 = vpack.c.b16 %v486, %v485
      %v524 = vpack.c.b16 %v488, %v487
      %v525 = vpack.c.b16 %v490, %v489
      %v526 = vpack.c.b16 %v492, %v491
      %v527 = vpack.c.b16 %v494, %v493
      %v528 = vpack.c.b16 %v496, %v495
      %561 = vmatprep.subr.bf16.mxu0 0
      %562 = vmatpush1.bf16.msra.mxu0 %v497
      %563 = vmatprep.subr.bf16.mxu0 0
      %564 = vmatpush1.bf16.msra.mxu0 %v498
      %565 = vmatprep.subr.bf16.mxu0 0
      %566 = vmatpush1.bf16.msra.mxu0 %v499
      %567 = vmatprep.subr.bf16.mxu0 0
      %568 = vmatpush1.bf16.msra.mxu0 %v500
      %569 = vmatprep.subr.bf16.mxu0 0
      %570 = vmatpush1.bf16.msra.mxu0 %v501
      %571 = vmatprep.subr.bf16.mxu0 0
      %572 = vmatpush1.bf16.msra.mxu0 %v502
      %573 = vmatprep.subr.bf16.mxu0 0
      %574 = vmatpush1.bf16.msra.mxu0 %v503
      %575 = vmatprep.subr.bf16.mxu0 0
      %576 = vmatpush1.bf16.msra.mxu0 %v504
      %577 = vmatprep.subr.bf16.mxu0 0
      %578 = vmatpush1.bf16.msra.mxu0 %v505
      %579 = vmatprep.subr.bf16.mxu0 0
      %580 = vmatpush1.bf16.msra.mxu0 %v506
      %581 = vmatprep.subr.bf16.mxu0 0
      %582 = vmatpush1.bf16.msra.mxu0 %v507
      %583 = vmatprep.subr.bf16.mxu0 0
      %584 = vmatpush1.bf16.msra.mxu0 %v508
      %585 = vmatprep.subr.bf16.mxu0 0
      %586 = vmatpush1.bf16.msra.mxu0 %v509
      %587 = vmatprep.subr.bf16.mxu0 0
      %588 = vmatpush1.bf16.msra.mxu0 %v510
      %589 = vmatprep.subr.bf16.mxu0 0
      %590 = vmatpush1.bf16.msra.mxu0 %v511
      %591 = vmatprep.subr.bf16.mxu0 0
      %592 = vmatpush1.bf16.msra.mxu0 %v512
      %593 = vmatprep.mubr.bf16.mxu0 %v295
      %594 = vmatmul.mubr.bf16.gmra.mrb[0].mxu0 %v294
      %v595 = vpop.f32.mrb[0].mxu0
      %v596 = vadd.f32 %v367, %v595
      %v597 = vpop.f32.mrb[0].mxu0
      %v598 = vpop.f32.mrb[0].mxu0
      %v599 = vadd.f32 %v367, %v598
      %v600 = vpop.f32.mrb[0].mxu0
      %601 = vdwg.mxu0
      %602 = vmatprep.subr.bf16.mxu0 0
      %603 = vmatpush1.bf16.msra.mxu0 %v513
      %604 = vmatprep.subr.bf16.mxu0 0
      %605 = vmatpush1.bf16.msra.mxu0 %v514
      %606 = vmatprep.subr.bf16.mxu0 0
      %607 = vmatpush1.bf16.msra.mxu0 %v515
      %608 = vmatprep.subr.bf16.mxu0 0
      %609 = vmatpush1.bf16.msra.mxu0 %v516
      %610 = vmatprep.subr.bf16.mxu0 0
      %611 = vmatpush1.bf16.msra.mxu0 %v517
      %612 = vmatprep.subr.bf16.mxu0 0
      %613 = vmatpush1.bf16.msra.mxu0 %v518
      %614 = vmatprep.subr.bf16.mxu0 0
      %615 = vmatpush1.bf16.msra.mxu0 %v519
      %616 = vmatprep.subr.bf16.mxu0 0
      %617 = vmatpush1.bf16.msra.mxu0 %v520
      %618 = vmatprep.subr.bf16.mxu0 0
      %619 = vmatpush1.bf16.msra.mxu0 %v521
      %620 = vmatprep.subr.bf16.mxu0 0
      %621 = vmatpush1.bf16.msra.mxu0 %v522
      %622 = vmatprep.subr.bf16.mxu0 0
      %623 = vmatpush1.bf16.msra.mxu0 %v523
      %624 = vmatprep.subr.bf16.mxu0 0
      %625 = vmatpush1.bf16.msra.mxu0 %v524
      %626 = vmatprep.subr.bf16.mxu0 0
      %627 = vmatpush1.bf16.msra.mxu0 %v525
      %628 = vmatprep.subr.bf16.mxu0 0
      %629 = vmatpush1.bf16.msra.mxu0 %v526
      %630 = vmatprep.subr.bf16.mxu0 0
      %631 = vmatpush1.bf16.msra.mxu0 %v527
      %632 = vmatprep.subr.bf16.mxu0 0
      %633 = vmatpush1.bf16.msra.mxu0 %v528
      %634 = vmatprep.mubr.bf16.mxu0 %v297
      %635 = vmatmul.mubr.bf16.gmra.mrb[0].mxu0 %v296
      %v636 = vpop.f32.mrb[0].mxu0
      %v637 = vadd.f32 %v596, %v636
      %v638 = vpop.f32.mrb[0].mxu0
      %v639 = vpop.f32.mrb[0].mxu0
      %v640 = vadd.f32 %v599, %v639
      %v641 = vpop.f32.mrb[0].mxu0
      %642 = vdwg.mxu0
      %v643 = vmax.f32 %v637, 0.0
      %v644 = vmax.f32 %v640, 0.0
      %v645 = vpack.c.bf16 %v644, %v643
      %v646 = vld [vmem:[%s3] sm:$0xf]
      %v647 = vld [vmem:[%s3 + $0x4] sm:$0xf]
      %v648 = vld [vmem:[%s3 + $0x8] sm:$0xf]
      %v649 = vld [vmem:[%s3 + $0xc] sm:$0xf]
      %v650 = vld [vmem:[%s3 + $0x10] sm:$0xf]
      %v651 = vld [vmem:[%s3 + $0x14] sm:$0xf]
      %v652 = vld [vmem:[%s3 + $0x18] sm:$0xf]
      %v653 = vld [vmem:[%s3 + $0x1c] sm:$0xf]
      %v654 = vld [vmem:[%s3 + $0x20] sm:$0xf]
      %v655 = vld [vmem:[%s3 + $0x24] sm:$0xf]
      %v656 = vld [vmem:[%s3 + $0x28] sm:$0xf]
      %v657 = vld [vmem:[%s3 + $0x2c] sm:$0xf]
      %v658 = vld [vmem:[%s3 + $0x30] sm:$0xf]
      %v659 = vld [vmem:[%s3 + $0x34] sm:$0xf]
      %v660 = vld [vmem:[%s3 + $0x38] sm:$0xf]
      %v661 = vld [vmem:[%s3 + $0x3c] sm:$0xf]
      %v662 = vld [vmem:[%s4] sm:$0x1]
      %v664 = vlaneseq
      %v665 = vshrl.u32 %v664, 7
      %v666 = vsub.s32 0, %v665
      %v667 = vrot.slane %v662, %v666
      %v685 = vunpack.c.l.b16 %v646
      %v686 = vunpack.c.l.b16 %v647
      %v687 = vunpack.c.l.b16 %v648
      %v688 = vunpack.c.l.b16 %v649
      %v689 = vunpack.c.l.b16 %v650
      %v690 = vunpack.c.l.b16 %v651
      %v691 = vunpack.c.l.b16 %v652
      %v692 = vunpack.c.l.b16 %v653
      %v693 = vunpack.c.l.b16 %v654
      %v694 = vunpack.c.l.b16 %v655
      %v695 = vunpack.c.l.b16 %v656
      %v696 = vunpack.c.l.b16 %v657
      %v697 = vunpack.c.l.b16 %v658
      %v698 = vunpack.c.l.b16 %v659
      %v699 = vunpack.c.l.b16 %v660
      %v700 = vunpack.c.l.b16 %v661
      %v701 = vpack.c.b16 %v686, %v685
      %v702 = vpack.c.b16 %v688, %v687
      %v703 = vpack.c.b16 %v690, %v689
      %v704 = vpack.c.b16 %v692, %v691
      %v705 = vpack.c.b16 %v694, %v693
      %v706 = vpack.c.b16 %v696, %v695
      %v707 = vpack.c.b16 %v698, %v697
      %v708 = vpack.c.b16 %v700, %v699
      %717 = vmatprep.subr.bf16.mxu0 0
      %718 = vmatpush1.bf16.msra.mxu0 %v701
      %719 = vmatprep.subr.bf16.mxu0 0
      %720 = vmatpush1.bf16.msra.mxu0 %v702
      %721 = vmatprep.subr.bf16.mxu0 0
      %722 = vmatpush1.bf16.msra.mxu0 %v703
      %723 = vmatprep.subr.bf16.mxu0 0
      %724 = vmatpush1.bf16.msra.mxu0 %v704
      %725 = vmatprep.subr.bf16.mxu0 0
      %726 = vmatpush1.bf16.msra.mxu0 %v705
      %727 = vmatprep.subr.bf16.mxu0 0
      %728 = vmatpush1.bf16.msra.mxu0 %v706
      %729 = vmatprep.subr.bf16.mxu0 0
      %730 = vmatpush1.bf16.msra.mxu0 %v707
      %731 = vmatprep.subr.bf16.mxu0 0
      %732 = vmatpush1.bf16.msra.mxu0 %v708
      %733 = vmatprep.subr.bf16.mxu0 0
      %734 = vmatpush1.bf16.msra.mxu0 0
      %735 = vmatprep.subr.bf16.mxu0 0
      %736 = vmatpush1.bf16.msra.mxu0 0
      %737 = vmatprep.subr.bf16.mxu0 0
      %738 = vmatpush1.bf16.msra.mxu0 0
      %739 = vmatprep.subr.bf16.mxu0 0
      %740 = vmatpush1.bf16.msra.mxu0 0
      %741 = vmatprep.subr.bf16.mxu0 0
      %742 = vmatpush1.bf16.msra.mxu0 0
      %743 = vmatprep.subr.bf16.mxu0 0
      %744 = vmatpush1.bf16.msra.mxu0 0
      %745 = vmatprep.subr.bf16.mxu0 0
      %746 = vmatpush1.bf16.msra.mxu0 0
      %747 = vmatprep.subr.bf16.mxu0 0
      %748 = vmatpush1.bf16.msra.mxu0 0
      %749 = vmatprep.mubr.bf16.mxu0 0
      %750 = vmatmul.mubr.bf16.gmra.mrb[0].mxu0 %v645
      %v751 = vpop.f32.mrb[0].mxu0
      %v752 = vadd.f32 %v667, %v751
      %v753 = vpop.f32.mrb[0].mxu0
      %v754 = vpop.f32.mrb[0].mxu0
      %v755 = vadd.f32 %v667, %v754
      %v756 = vpop.f32.mrb[0].mxu0
      %757 = vdwg.mxu0
      %v758 = vmax.f32 %v752, 0.0
      %v759 = vmax.f32 %v755, 0.0
      %v760 = vpack.c.bf16 %v759, %v758
      %v761 = vld [vmem:[%s5] sm:$0xf]
      %v762 = vld [vmem:[%s5 + $0x4] sm:$0xf]
      %v763 = vld [vmem:[%s5 + $0x8] sm:$0xf]
      %v764 = vld [vmem:[%s5 + $0xc] sm:$0xf]
      %v765 = vld [vmem:[%s5 + $0x10] sm:$0xf]
      %v766 = vld [vmem:[%s5 + $0x14] sm:$0xf]
      %v767 = vld [vmem:[%s5 + $0x18] sm:$0xf]
      %v768 = vld [vmem:[%s5 + $0x1c] sm:$0xf]
      %v769 = vld [vmem:[%s5 + $0x20] sm:$0xf]
      %v770 = vld [vmem:[%s5 + $0x24] sm:$0xf]
      %v771 = vld [vmem:[%s5 + $0x28] sm:$0xf]
      %v772 = vld [vmem:[%s5 + $0x2c] sm:$0xf]
      %v773 = vld [vmem:[%s5 + $0x30] sm:$0xf]
      %v774 = vld [vmem:[%s5 + $0x34] sm:$0xf]
      %v775 = vld [vmem:[%s5 + $0x38] sm:$0xf]
      %v776 = vld [vmem:[%s5 + $0x3c] sm:$0xf]
      %v777 = vld [vmem:[%s6] sm:$0x1]
      %v779 = vlaneseq
      %v780 = vshrl.u32 %v779, 7
      %v781 = vsub.s32 0, %v780
      %v782 = vrot.slane %v777, %v781
      %v800 = vunpack.c.l.b16 %v761
      %v801 = vunpack.c.l.b16 %v762
      %v802 = vunpack.c.l.b16 %v763
      %v803 = vunpack.c.l.b16 %v764
      %v804 = vunpack.c.l.b16 %v765
      %v805 = vunpack.c.l.b16 %v766
      %v806 = vunpack.c.l.b16 %v767
      %v807 = vunpack.c.l.b16 %v768
      %v808 = vunpack.c.l.b16 %v769
      %v809 = vunpack.c.l.b16 %v770
      %v810 = vunpack.c.l.b16 %v771
      %v811 = vunpack.c.l.b16 %v772
      %v812 = vunpack.c.l.b16 %v773
      %v813 = vunpack.c.l.b16 %v774
      %v814 = vunpack.c.l.b16 %v775
      %v815 = vunpack.c.l.b16 %v776
      %v816 = vpack.c.b16 %v801, %v800
      %v817 = vpack.c.b16 %v803, %v802
      %v818 = vpack.c.b16 %v805, %v804
      %v819 = vpack.c.b16 %v807, %v806
      %v820 = vpack.c.b16 %v809, %v808
      %v821 = vpack.c.b16 %v811, %v810
      %v822 = vpack.c.b16 %v813, %v812
      %v823 = vpack.c.b16 %v815, %v814
      %832 = vmatprep.subr.bf16.mxu0 0
      %833 = vmatpush1.bf16.msra.mxu0 %v816
      %834 = vmatprep.subr.bf16.mxu0 0
      %835 = vmatpush1.bf16.msra.mxu0 %v817
      %836 = vmatprep.subr.bf16.mxu0 0
      %837 = vmatpush1.bf16.msra.mxu0 %v818
      %838 = vmatprep.subr.bf16.mxu0 0
      %839 = vmatpush1.bf16.msra.mxu0 %v819
      %840 = vmatprep.subr.bf16.mxu0 0
      %841 = vmatpush1.bf16.msra.mxu0 %v820
      %842 = vmatprep.subr.bf16.mxu0 0
      %843 = vmatpush1.bf16.msra.mxu0 %v821
      %844 = vmatprep.subr.bf16.mxu0 0
      %845 = vmatpush1.bf16.msra.mxu0 %v822
      %846 = vmatprep.subr.bf16.mxu0 0
      %847 = vmatpush1.bf16.msra.mxu0 %v823
      %848 = vmatprep.subr.bf16.mxu0 0
      %849 = vmatpush1.bf16.msra.mxu0 0
      %850 = vmatprep.subr.bf16.mxu0 0
      %851 = vmatpush1.bf16.msra.mxu0 0
      %852 = vmatprep.subr.bf16.mxu0 0
      %853 = vmatpush1.bf16.msra.mxu0 0
      %854 = vmatprep.subr.bf16.mxu0 0
      %855 = vmatpush1.bf16.msra.mxu0 0
      %856 = vmatprep.subr.bf16.mxu0 0
      %857 = vmatpush1.bf16.msra.mxu0 0
      %858 = vmatprep.subr.bf16.mxu0 0
      %859 = vmatpush1.bf16.msra.mxu0 0
      %860 = vmatprep.subr.bf16.mxu0 0
      %861 = vmatpush1.bf16.msra.mxu0 0
      %862 = vmatprep.subr.bf16.mxu0 0
      %863 = vmatpush1.bf16.msra.mxu0 0
      %864 = vmatprep.mubr.bf16.mxu0 0
      %865 = vmatmul.mubr.bf16.gmra.mrb[0].mxu0 %v760
      %v866 = vpop.f32.mrb[0].mxu0
      %v867 = vadd.f32 %v782, %v866
      %v868 = vpop.f32.mrb[0].mxu0
      %v869 = vpop.f32.mrb[0].mxu0
      %v870 = vadd.f32 %v782, %v869
      %v871 = vpop.f32.mrb[0].mxu0
      %872 = vdwg.mxu0
      %873 = vst [vmem:[%s283] sm:$0xff] %v867
      %874 = vst [vmem:[%s283 + $0x8] sm:$0xff] %v870
      %s875 = smul.u32 2, %s18
      %p876 = scmp.lt.s32.totalorder %s875, 3
      %s877 = scalar_select %p876, %s875, 3
      %s878 = smul.addr %s877, 8
      %s879 = scalar_lea.vmem %s7, %s878
      // Predicated region
      $region49: #{toknet_forward.1} parent=47 // pred_check
        %p880 = pneg %p188
      $region50: #{toknet_forward.1} parent=47 // pred_check_branch
        %882 = sbr.rel (%p880) target = $region52
      $region51: #{toknet_forward.1} parent=47 // pred_region
        %s883 = smul.u32 2, %s18
      $region52: #{toknet_forward.1} parent=47 // pred_fallthru
        _
    $region48: #{toknet_forward.1} parent=5 // pred_fallthru
      _
    %p884 = scmp.le.s32.totalorder 2, %s13
    // Predicated region
    $region53: #{toknet_forward.1} parent=5 // pred_check
      %p885 = pneg %p884
    $region54: #{toknet_forward.1} parent=5 // pred_check_branch
      %887 = sbr.rel (%p885) target = $region56
    $region55: #{toknet_forward.1} parent=5 // pred_region
      %s888 = ssub.s32 %s13, 2
      // Predicated region
      $region57: #{toknet_forward.1} parent=55 // pred_check
        %p889 = pneg %p194
      $region58: #{toknet_forward.1} parent=55 // pred_check_branch
        %891 = sbr.rel (%p889) target = $region60
      $region59: #{toknet_forward.1} parent=55 // pred_region
        %s892 = smul.u32 2, %s19
        %p893 = scmp.lt.s32.totalorder %s892, 3
        %s894 = scalar_select %p893, %s892, 3
        %s895 = smul.addr %s894, 8
        %s896 = scalar_lea.vmem %s7, %s895
      $region60: #{toknet_forward.1} parent=55 // pred_fallthru
        _
    $region56: #{toknet_forward.1} parent=5 // pred_fallthru
      _
  $region6: #{toknet_forward.1} parent=0 // loop_footer
    %s17 = sadd.s32 1, %s13
  $region7: #{toknet_forward.1} parent=0 // loop_footer_branch
    %12 = sbr.rel target = $region3
  $region8: #{toknet_forward.1} parent=0 // loop_exit
    _

</llo_original>
